<compile_context>
chip_gen: v6e
topology: v6e:2x2x1
jax: 0.10.0
libtpu: 0.0.40
codegen_flags: <defaults>
</compile_context>

<pallas_src>
import jax
import jax.numpy as jnp
from jax import lax
from jax.experimental import pallas as pl
from jax.experimental.pallas import tpu as pltpu

LANE = 128
SUBLANE = 8


def _round_up(x, m):
    return (x + m - 1) // m * m


def rnn_kernel(x_ref, whT_ref, wxT_ref, wyT_ref, bf_ref, by_ref,
               out_ref, h_ref, ph_ref):
    """One (batch block, time chunk) of the RNN.

    x_ref   : (t_blk, b_blk, D_in)    time-major inputs (compute dtype)
    whT_ref : (H_pad, H_pad)          recurrent weight, pre-transposed, padded
    wxT_ref : (D_in, H_pad)           input weight, pre-transposed, padded
    wyT_ref : (H_pad, DO_PAD)         output weight, transposed + lane-padded
    bf_ref  : (1, H_pad)              fused bias (bh + bx), f32
    by_ref  : (1, DO_PAD)             output bias, f32
    out_ref : (t_blk, b_blk, DO_PAD)  time-major outputs, f32
    h_ref   : (b_blk, H_pad) VMEM     hidden-state carry across time chunks
    ph_ref  : (t_blk, b_blk, H_pad)   staging: holds p_t, overwritten with h_t
    """
    t_blk, b_blk, d_in = x_ref.shape
    h_dim = whT_ref.shape[0]

    # Reset the hidden-state carry at the start of each batch shard's sequence.
    @pl.when(pl.program_id(1) == 0)
    def _():
        h_ref[...] = jnp.zeros_like(h_ref)

    # ---- Phase 1: input projection for the WHOLE chunk as one GEMM ---------
    x_all = x_ref[...].reshape(t_blk * b_blk, d_in)
    p = jnp.dot(x_all, wxT_ref[...], preferred_element_type=jnp.float32)
    ph_ref[...] = (p + bf_ref[...]).reshape(t_blk, b_blk, h_dim)

    # ---- Phase 2: the only serial part ------------------------------------
    wh = whT_ref[...]                       # hoisted: one VMEM->vreg load total

    def step(t, h):
        pre = jnp.dot(h.astype(wh.dtype), wh,
                      preferred_element_type=jnp.float32) + ph_ref[t]
        h = jax.nn.sigmoid(pre)             # f32 sigmoid (v5e: no bf16 VPU/EUP)
        ph_ref[t] = h                       # dense time-major tile store
        return h

    h0 = h_ref[...]
    if t_blk <= 16:                         # short chunk: full Python unroll
        h = h0
        for t in range(t_blk):
            h = step(t, h)
    else:                                   # long chunk: bound live ranges
        h = lax.fori_loop(0, t_blk, step, h0, unroll=min(8, t_blk))
    h_ref[...] = h

    # ---- Phase 3: output projection for the WHOLE chunk, lane-dense --------
    hs = ph_ref[...].reshape(t_blk * b_blk, h_dim)
    y = jnp.dot(hs.astype(wyT_ref.dtype), wyT_ref[...],
                preferred_element_type=jnp.float32) + by_ref[...]
    out_ref[...] = y.reshape(t_blk, b_blk, -1).astype(out_ref.dtype)


def rnn_forward(x, params, *, compute_dtype=jnp.float32, batch_block=128,
                time_block=None, single_buffer_weights=False,
                vmem_limit_bytes=32 * 1024 * 1024):
    """x: (B, T, input_dim) f32 -> (B, T, output_dim) f32.

    batch_block: rows of the recurrence per grid step (fills MXU M; on v7x pick
        ~ceil(B_padded/2) so the 'parallel' axis really splits across both TCs).
    time_block: timesteps per chunk (bounds VMEM; enables x/y DMA pipelining).
    single_buffer_weights: pl.Buffered(1) on constant weight specs (v7x, big H).
    vmem_limit_bytes: raise toward ~100 MiB on v5e/v6e, ~48-56 MiB on v7x for
        large shapes; 32 MiB is safe everywhere at demo scale.
    """
    whT, wxT, wyT, b_fused, by = params
    B, T, D_in = x.shape
    H = whT.shape[0]
    D_out = wyT.shape[1]

    h_pad = _round_up(H, LANE)                       # lane-dense GEMMs
    do_pad = _round_up(D_out, LANE)                  # lane-dense output store

    b_blk = max(SUBLANE, min(_round_up(B, SUBLANE), _round_up(batch_block, SUBLANE)))
    b_pad = _round_up(B, b_blk)

    if time_block is None:
        time_block = 64
    t_blk = min(T, max(1, time_block))
    t_pad = _round_up(T, t_blk)

    # ---- weight / bias padding (zero pad rows => padded hidden units inert) -
    whT_p = jnp.zeros((h_pad, h_pad), compute_dtype).at[:H, :H].set(
        whT.astype(compute_dtype))
    wxT_p = jnp.zeros((D_in, h_pad), compute_dtype).at[:, :H].set(
        wxT.astype(compute_dtype))
    wyT_p = jnp.zeros((h_pad, do_pad), compute_dtype).at[:H, :D_out].set(
        wyT.astype(compute_dtype))
    bf_p = jnp.zeros((1, h_pad), jnp.float32).at[:, :H].set(
        b_fused.astype(jnp.float32))
    by_p = jnp.zeros((1, do_pad), jnp.float32).at[:, :D_out].set(
        by.astype(jnp.float32))

    # ---- x -> time-major, pad only if needed (layout plumbing on HBM, once) -
    x_t = jnp.transpose(x, (1, 0, 2)).astype(compute_dtype)     # (T, B, D_in)
    if (t_pad, b_pad) != (T, B):
        x_t = jnp.zeros((t_pad, b_pad, D_in), compute_dtype).at[:T, :B].set(x_t)

    grid = (b_pad // b_blk, t_pad // t_blk)
    const2 = lambda b, t: (0, 0)
    wmode = dict(pipeline_mode=pl.Buffered(1)) if single_buffer_weights else {}

    out = pl.pallas_call(
        rnn_kernel,
        out_shape=jax.ShapeDtypeStruct((t_pad, b_pad, do_pad), jnp.float32),
        grid_spec=pltpu.PrefetchScalarGridSpec(
            num_scalar_prefetch=0,
            grid=grid,
            in_specs=[
                pl.BlockSpec((t_blk, b_blk, D_in), lambda b, t: (t, b, 0)),   # x
                pl.BlockSpec((h_pad, h_pad), const2, **wmode),                # Wh^T
                pl.BlockSpec((D_in, h_pad), const2, **wmode),                 # Wx^T
                pl.BlockSpec((h_pad, do_pad), const2, **wmode),               # Wy^T
                pl.BlockSpec((1, h_pad), const2, **wmode),                    # bh+bx
                pl.BlockSpec((1, do_pad), const2, **wmode),                   # by
            ],
            out_specs=pl.BlockSpec((t_blk, b_blk, do_pad), lambda b, t: (t, b, 0)),
            scratch_shapes=[
                pltpu.VMEM((b_blk, h_pad), jnp.float32),          # h carry
                pltpu.VMEM((t_blk, b_blk, h_pad), jnp.float32),   # p_t / h_t
            ]),
        compiler_params=pltpu.CompilerParams(
            dimension_semantics=("parallel", "arbitrary"),
            vmem_limit_bytes=vmem_limit_bytes),
    )(x_t, whT_p, wxT_p, wyT_p, bf_p, by_p)

    # back to (B, T, D_out)
    return jnp.transpose(out[:T, :B, :D_out], (1, 0, 2))


def init_params(key, input_dim, hidden_dim, output_dim):
    """Deterministic init mimicking nn.Linear (uniform +-1/sqrt(fan_in))."""
    ks = jax.random.split(key, 6)

    def lin(kw, kb, fan_in, fan_out):
        bound = 1.0 / jnp.sqrt(fan_in)
        w = jax.random.uniform(kw, (fan_out, fan_in), jnp.float32, -bound, bound)
        b = jax.random.uniform(kb, (fan_out,), jnp.float32, -bound, bound)
        return w, b

    Wh, bh = lin(ks[0], ks[1], hidden_dim, hidden_dim)
    Wx, bx = lin(ks[2], ks[3], input_dim, hidden_dim)
    Wy, by = lin(ks[4], ks[5], hidden_dim, output_dim)

    # kernel takes transposed weights, a single fused (bh+bx) bias, (1,N) biases
    return (Wh.T, Wx.T, Wy.T,
            (bh + bx).reshape(1, hidden_dim),
            by.reshape(1, output_dim))


def rnn_reference(x, params):
    whT, wxT, wyT, b_fused, by = params
    B, T, _ = x.shape
    H = whT.shape[0]
    h = jnp.zeros((B, H), jnp.float32)
    outs = []
    for i in range(T):
        h = jax.nn.sigmoid(h @ whT + x[:, i, :] @ wxT + b_fused)
        outs.append(h @ wyT + by)
    return jnp.stack(outs, axis=1)


if __name__ == "__main__":
    batch, seq, input_dim, hidden_dim, output_dim = 2, 8, 4, 32, 4

    key = jax.random.PRNGKey(0)
    kx, kp, kx2 = jax.random.split(key, 3)
    x = jax.random.normal(kx, (batch, seq, input_dim), jnp.float32)
    params = init_params(kp, input_dim, hidden_dim, output_dim)
    ref = rnn_reference(x, params)

    # 1) f32 path, single time chunk: exact semantics of the PyTorch module
    out = jax.block_until_ready(rnn_forward(x, params))
    assert out.shape == (batch, seq, output_dim)
    assert jnp.allclose(out, ref, atol=1e-5, rtol=1e-5)

    # 2) multi time-chunk path (exercises the hidden-state carry across grid steps)
    seq2 = 24
    x2 = jax.random.normal(kx2, (batch, seq2, input_dim), jnp.float32)
    ref2 = rnn_reference(x2, params)
    out2 = jax.block_until_ready(rnn_forward(x2, params, time_block=8))
    assert out2.shape == (batch, seq2, output_dim)
    assert jnp.allclose(out2, ref2, atol=1e-5, rtol=1e-5)

    # 3) bf16-weight path (f32 accumulation, f32 sigmoid) — loose numerical check
    out_bf16 = jax.block_until_ready(
        rnn_forward(x, params, compute_dtype=jnp.bfloat16))
    assert out_bf16.shape == (batch, seq, output_dim)
    assert jnp.allclose(out_bf16, ref, atol=1e-1, rtol=1e-1)

    print("KERNEL_OK")
</pallas_src>

<mosaic_0001>
module attributes {stable_mosaic.version = 11 : i64} {
  func.func @rnn_kernel(%arg0: i32, %arg1: i32, %arg2: memref<8x8x4xf32, #tpu.memory_space<vmem>>, %arg3: memref<128x128xf32, #tpu.memory_space<vmem>>, %arg4: memref<4x128xf32, #tpu.memory_space<vmem>>, %arg5: memref<128x128xf32, #tpu.memory_space<vmem>>, %arg6: memref<1x128xf32, #tpu.memory_space<vmem>>, %arg7: memref<1x128xf32, #tpu.memory_space<vmem>>, %arg8: memref<8x8x128xf32, #tpu.memory_space<vmem>>, %arg9: memref<8x128xf32, #tpu.memory_space<vmem>>, %arg10: memref<8x8x128xf32, #tpu.memory_space<vmem>>) attributes {dimension_semantics = [#tpu.dimension_semantics<parallel>, #tpu.dimension_semantics<arbitrary>], iteration_bounds = array<i64: 1, 1>, scalar_prefetch = 0 : i64, scratch_operands = 2 : i64, tpu.core_type = #tpu.core_type<tc>, window_params = [{transform_indices = @transform_0, window_bounds = array<i64: 8, 8, 4>}, {pipeline_mode = #tpu.pipeline_mode<synchronous>, transform_indices = @transform_1, window_bounds = array<i64: 128, 128>}, {pipeline_mode = #tpu.pipeline_mode<synchronous>, transform_indices = @transform_2, window_bounds = array<i64: 4, 128>}, {pipeline_mode = #tpu.pipeline_mode<synchronous>, transform_indices = @transform_3, window_bounds = array<i64: 128, 128>}, {pipeline_mode = #tpu.pipeline_mode<synchronous>, transform_indices = @transform_4, window_bounds = array<i64: 1, 128>}, {pipeline_mode = #tpu.pipeline_mode<synchronous>, transform_indices = @transform_5, window_bounds = array<i64: 1, 128>}, {transform_indices = @transform_6, window_bounds = array<i64: 8, 8, 128>}]} {
    %c0_i32 = arith.constant 0 : i32
    %0 = arith.cmpi eq, %arg1, %c0_i32 : i32
    %1 = arith.extui %0 : i1 to i32
    %c0_i32_0 = arith.constant 0 : i32
    %2 = arith.cmpi ne, %1, %c0_i32_0 : i32
    scf.if %2 {
      %cst_84 = arith.constant 0.000000e+00 : f32
      %120 = vector.broadcast %cst_84 : f32 to vector<8x128xf32>
      %c0_85 = arith.constant 0 : index
      %c0_86 = arith.constant 0 : index
      %121 = vector.load %arg9[%c0_85, %c0_86] : memref<8x128xf32, #tpu.memory_space<vmem>>, vector<8x128xf32>
      tpu.vector_store %arg9[%c0_85, %c0_86], %120 {strides = array<i32>} : memref<8x128xf32, #tpu.memory_space<vmem>>, vector<8x128xf32>,
    } else {
    }
    %c0 = arith.constant 0 : index
    %c0_1 = arith.constant 0 : index
    %c0_2 = arith.constant 0 : index
    %3 = vector.load %arg2[%c0, %c0_1, %c0_2] : memref<8x8x4xf32, #tpu.memory_space<vmem>>, vector<8x8x4xf32>
    %4 = vector.shape_cast %3 : vector<8x8x4xf32> to vector<64x4xf32>
    %c0_3 = arith.constant 0 : index
    %c0_4 = arith.constant 0 : index
    %5 = vector.load %arg4[%c0_3, %c0_4] : memref<4x128xf32, #tpu.memory_space<vmem>>, vector<4x128xf32>
    %cst = arith.constant dense<0.000000e+00> : vector<64x128xf32>
    %6 = tpu.matmul %4, %5, %cst {dimension_numbers = #tpu.dot_dimension_numbers<[1], [0], [0], [1], [0, 0, 1, 1], [], []>} : vector<64x4xf32>, vector<4x128xf32>, vector<64x128xf32> -> vector<64x128xf32>
    %c0_5 = arith.constant 0 : index
    %c0_6 = arith.constant 0 : index
    %7 = vector.load %arg6[%c0_5, %c0_6] : memref<1x128xf32, #tpu.memory_space<vmem>>, vector<1x128xf32>
    %8 = vector.broadcast %7 : vector<1x128xf32> to vector<64x128xf32>
    %9 = arith.addf %6, %8 : vector<64x128xf32>
    %10 = vector.shape_cast %9 : vector<64x128xf32> to vector<8x8x128xf32>
    %c0_7 = arith.constant 0 : index
    %c0_8 = arith.constant 0 : index
    %c0_9 = arith.constant 0 : index
    %11 = vector.load %arg10[%c0_7, %c0_8, %c0_9] : memref<8x8x128xf32, #tpu.memory_space<vmem>>, vector<8x8x128xf32>
    tpu.vector_store %arg10[%c0_7, %c0_8, %c0_9], %10 {strides = array<i32>} : memref<8x8x128xf32, #tpu.memory_space<vmem>>, vector<8x8x128xf32>,
    %c0_10 = arith.constant 0 : index
    %c0_11 = arith.constant 0 : index
    %12 = vector.load %arg3[%c0_10, %c0_11] : memref<128x128xf32, #tpu.memory_space<vmem>>, vector<128x128xf32>
    %c0_12 = arith.constant 0 : index
    %c0_13 = arith.constant 0 : index
    %13 = vector.load %arg9[%c0_12, %c0_13] : memref<8x128xf32, #tpu.memory_space<vmem>>, vector<8x128xf32>
    %cst_14 = arith.constant dense<0.000000e+00> : vector<8x128xf32>
    %14 = tpu.matmul %13, %12, %cst_14 {dimension_numbers = #tpu.dot_dimension_numbers<[1], [0], [0], [1], [0, 0, 1, 1], [], []>} : vector<8x128xf32>, vector<128x128xf32>, vector<8x128xf32> -> vector<8x128xf32>
    %c0_15 = arith.constant 0 : index
    %c0_16 = arith.constant 0 : index
    %c0_17 = arith.constant 0 : index
    %15 = vector.load %arg10[%c0_15, %c0_16, %c0_17] : memref<8x8x128xf32, #tpu.memory_space<vmem>>, vector<1x8x128xf32>
    %16 = vector.shape_cast %15 : vector<1x8x128xf32> to vector<8x128xf32>
    %17 = arith.addf %14, %16 : vector<8x128xf32>
    %18 = arith.negf %17 : vector<8x128xf32>
    %19 = math.exp %18 : vector<8x128xf32>
    %cst_18 = arith.constant 1.000000e+00 : f32
    %20 = vector.broadcast %cst_18 : f32 to vector<8x128xf32>
    %21 = arith.addf %20, %19 : vector<8x128xf32>
    %22 = arith.divf %20, %21 : vector<8x128xf32>
    %c0_19 = arith.constant 0 : index
    %c0_20 = arith.constant 0 : index
    %c0_21 = arith.constant 0 : index
    %23 = vector.load %arg10[%c0_19, %c0_20, %c0_21] : memref<8x8x128xf32, #tpu.memory_space<vmem>>, vector<1x8x128xf32>
    %24 = vector.shape_cast %23 : vector<1x8x128xf32> to vector<8x128xf32>
    %25 = vector.shape_cast %22 : vector<8x128xf32> to vector<1x8x128xf32>
    tpu.vector_store %arg10[%c0_19, %c0_20, %c0_21], %25 {strides = array<i32>} : memref<8x8x128xf32, #tpu.memory_space<vmem>>, vector<1x8x128xf32>,
    %cst_22 = arith.constant dense<0.000000e+00> : vector<8x128xf32>
    %26 = tpu.matmul %22, %12, %cst_22 {dimension_numbers = #tpu.dot_dimension_numbers<[1], [0], [0], [1], [0, 0, 1, 1], [], []>} : vector<8x128xf32>, vector<128x128xf32>, vector<8x128xf32> -> vector<8x128xf32>
    %c1 = arith.constant 1 : index
    %c0_23 = arith.constant 0 : index
    %c0_24 = arith.constant 0 : index
    %27 = vector.load %arg10[%c1, %c0_23, %c0_24] : memref<8x8x128xf32, #tpu.memory_space<vmem>>, vector<1x8x128xf32>
    %28 = vector.shape_cast %27 : vector<1x8x128xf32> to vector<8x128xf32>
    %29 = arith.addf %26, %28 : vector<8x128xf32>
    %30 = arith.negf %29 : vector<8x128xf32>
    %31 = math.exp %30 : vector<8x128xf32>
    %cst_25 = arith.constant 1.000000e+00 : f32
    %32 = vector.broadcast %cst_25 : f32 to vector<8x128xf32>
    %33 = arith.addf %32, %31 : vector<8x128xf32>
    %34 = arith.divf %32, %33 : vector<8x128xf32>
    %c1_26 = arith.constant 1 : index
    %c0_27 = arith.constant 0 : index
    %c0_28 = arith.constant 0 : index
    %35 = vector.load %arg10[%c1_26, %c0_27, %c0_28] : memref<8x8x128xf32, #tpu.memory_space<vmem>>, vector<1x8x128xf32>
    %36 = vector.shape_cast %35 : vector<1x8x128xf32> to vector<8x128xf32>
    %37 = vector.shape_cast %34 : vector<8x128xf32> to vector<1x8x128xf32>
    tpu.vector_store %arg10[%c1_26, %c0_27, %c0_28], %37 {strides = array<i32>} : memref<8x8x128xf32, #tpu.memory_space<vmem>>, vector<1x8x128xf32>,
    %cst_29 = arith.constant dense<0.000000e+00> : vector<8x128xf32>
    %38 = tpu.matmul %34, %12, %cst_29 {dimension_numbers = #tpu.dot_dimension_numbers<[1], [0], [0], [1], [0, 0, 1, 1], [], []>} : vector<8x128xf32>, vector<128x128xf32>, vector<8x128xf32> -> vector<8x128xf32>
    %c2 = arith.constant 2 : index
    %c0_30 = arith.constant 0 : index
    %c0_31 = arith.constant 0 : index
    %39 = vector.load %arg10[%c2, %c0_30, %c0_31] : memref<8x8x128xf32, #tpu.memory_space<vmem>>, vector<1x8x128xf32>
    %40 = vector.shape_cast %39 : vector<1x8x128xf32> to vector<8x128xf32>
    %41 = arith.addf %38, %40 : vector<8x128xf32>
    %42 = arith.negf %41 : vector<8x128xf32>
    %43 = math.exp %42 : vector<8x128xf32>
    %cst_32 = arith.constant 1.000000e+00 : f32
    %44 = vector.broadcast %cst_32 : f32 to vector<8x128xf32>
    %45 = arith.addf %44, %43 : vector<8x128xf32>
    %46 = arith.divf %44, %45 : vector<8x128xf32>
    %c2_33 = arith.constant 2 : index
    %c0_34 = arith.constant 0 : index
    %c0_35 = arith.constant 0 : index
    %47 = vector.load %arg10[%c2_33, %c0_34, %c0_35] : memref<8x8x128xf32, #tpu.memory_space<vmem>>, vector<1x8x128xf32>
    %48 = vector.shape_cast %47 : vector<1x8x128xf32> to vector<8x128xf32>
    %49 = vector.shape_cast %46 : vector<8x128xf32> to vector<1x8x128xf32>
    tpu.vector_store %arg10[%c2_33, %c0_34, %c0_35], %49 {strides = array<i32>} : memref<8x8x128xf32, #tpu.memory_space<vmem>>, vector<1x8x128xf32>,
    %cst_36 = arith.constant dense<0.000000e+00> : vector<8x128xf32>
    %50 = tpu.matmul %46, %12, %cst_36 {dimension_numbers = #tpu.dot_dimension_numbers<[1], [0], [0], [1], [0, 0, 1, 1], [], []>} : vector<8x128xf32>, vector<128x128xf32>, vector<8x128xf32> -> vector<8x128xf32>
    %c3 = arith.constant 3 : index
    %c0_37 = arith.constant 0 : index
    %c0_38 = arith.constant 0 : index
    %51 = vector.load %arg10[%c3, %c0_37, %c0_38] : memref<8x8x128xf32, #tpu.memory_space<vmem>>, vector<1x8x128xf32>
    %52 = vector.shape_cast %51 : vector<1x8x128xf32> to vector<8x128xf32>
    %53 = arith.addf %50, %52 : vector<8x128xf32>
    %54 = arith.negf %53 : vector<8x128xf32>
    %55 = math.exp %54 : vector<8x128xf32>
    %cst_39 = arith.constant 1.000000e+00 : f32
    %56 = vector.broadcast %cst_39 : f32 to vector<8x128xf32>
    %57 = arith.addf %56, %55 : vector<8x128xf32>
    %58 = arith.divf %56, %57 : vector<8x128xf32>
    %c3_40 = arith.constant 3 : index
    %c0_41 = arith.constant 0 : index
    %c0_42 = arith.constant 0 : index
    %59 = vector.load %arg10[%c3_40, %c0_41, %c0_42] : memref<8x8x128xf32, #tpu.memory_space<vmem>>, vector<1x8x128xf32>
    %60 = vector.shape_cast %59 : vector<1x8x128xf32> to vector<8x128xf32>
    %61 = vector.shape_cast %58 : vector<8x128xf32> to vector<1x8x128xf32>
    tpu.vector_store %arg10[%c3_40, %c0_41, %c0_42], %61 {strides = array<i32>} : memref<8x8x128xf32, #tpu.memory_space<vmem>>, vector<1x8x128xf32>,
    %cst_43 = arith.constant dense<0.000000e+00> : vector<8x128xf32>
    %62 = tpu.matmul %58, %12, %cst_43 {dimension_numbers = #tpu.dot_dimension_numbers<[1], [0], [0], [1], [0, 0, 1, 1], [], []>} : vector<8x128xf32>, vector<128x128xf32>, vector<8x128xf32> -> vector<8x128xf32>
    %c4 = arith.constant 4 : index
    %c0_44 = arith.constant 0 : index
    %c0_45 = arith.constant 0 : index
    %63 = vector.load %arg10[%c4, %c0_44, %c0_45] : memref<8x8x128xf32, #tpu.memory_space<vmem>>, vector<1x8x128xf32>
    %64 = vector.shape_cast %63 : vector<1x8x128xf32> to vector<8x128xf32>
    %65 = arith.addf %62, %64 : vector<8x128xf32>
    %66 = arith.negf %65 : vector<8x128xf32>
    %67 = math.exp %66 : vector<8x128xf32>
    %cst_46 = arith.constant 1.000000e+00 : f32
    %68 = vector.broadcast %cst_46 : f32 to vector<8x128xf32>
    %69 = arith.addf %68, %67 : vector<8x128xf32>
    %70 = arith.divf %68, %69 : vector<8x128xf32>
    %c4_47 = arith.constant 4 : index
    %c0_48 = arith.constant 0 : index
    %c0_49 = arith.constant 0 : index
    %71 = vector.load %arg10[%c4_47, %c0_48, %c0_49] : memref<8x8x128xf32, #tpu.memory_space<vmem>>, vector<1x8x128xf32>
    %72 = vector.shape_cast %71 : vector<1x8x128xf32> to vector<8x128xf32>
    %73 = vector.shape_cast %70 : vector<8x128xf32> to vector<1x8x128xf32>
    tpu.vector_store %arg10[%c4_47, %c0_48, %c0_49], %73 {strides = array<i32>} : memref<8x8x128xf32, #tpu.memory_space<vmem>>, vector<1x8x128xf32>,
    %cst_50 = arith.constant dense<0.000000e+00> : vector<8x128xf32>
    %74 = tpu.matmul %70, %12, %cst_50 {dimension_numbers = #tpu.dot_dimension_numbers<[1], [0], [0], [1], [0, 0, 1, 1], [], []>} : vector<8x128xf32>, vector<128x128xf32>, vector<8x128xf32> -> vector<8x128xf32>
    %c5 = arith.constant 5 : index
    %c0_51 = arith.constant 0 : index
    %c0_52 = arith.constant 0 : index
    %75 = vector.load %arg10[%c5, %c0_51, %c0_52] : memref<8x8x128xf32, #tpu.memory_space<vmem>>, vector<1x8x128xf32>
    %76 = vector.shape_cast %75 : vector<1x8x128xf32> to vector<8x128xf32>
    %77 = arith.addf %74, %76 : vector<8x128xf32>
    %78 = arith.negf %77 : vector<8x128xf32>
    %79 = math.exp %78 : vector<8x128xf32>
    %cst_53 = arith.constant 1.000000e+00 : f32
    %80 = vector.broadcast %cst_53 : f32 to vector<8x128xf32>
    %81 = arith.addf %80, %79 : vector<8x128xf32>
    %82 = arith.divf %80, %81 : vector<8x128xf32>
    %c5_54 = arith.constant 5 : index
    %c0_55 = arith.constant 0 : index
    %c0_56 = arith.constant 0 : index
    %83 = vector.load %arg10[%c5_54, %c0_55, %c0_56] : memref<8x8x128xf32, #tpu.memory_space<vmem>>, vector<1x8x128xf32>
    %84 = vector.shape_cast %83 : vector<1x8x128xf32> to vector<8x128xf32>
    %85 = vector.shape_cast %82 : vector<8x128xf32> to vector<1x8x128xf32>
    tpu.vector_store %arg10[%c5_54, %c0_55, %c0_56], %85 {strides = array<i32>} : memref<8x8x128xf32, #tpu.memory_space<vmem>>, vector<1x8x128xf32>,
    %cst_57 = arith.constant dense<0.000000e+00> : vector<8x128xf32>
    %86 = tpu.matmul %82, %12, %cst_57 {dimension_numbers = #tpu.dot_dimension_numbers<[1], [0], [0], [1], [0, 0, 1, 1], [], []>} : vector<8x128xf32>, vector<128x128xf32>, vector<8x128xf32> -> vector<8x128xf32>
    %c6 = arith.constant 6 : index
    %c0_58 = arith.constant 0 : index
    %c0_59 = arith.constant 0 : index
    %87 = vector.load %arg10[%c6, %c0_58, %c0_59] : memref<8x8x128xf32, #tpu.memory_space<vmem>>, vector<1x8x128xf32>
    %88 = vector.shape_cast %87 : vector<1x8x128xf32> to vector<8x128xf32>
    %89 = arith.addf %86, %88 : vector<8x128xf32>
    %90 = arith.negf %89 : vector<8x128xf32>
    %91 = math.exp %90 : vector<8x128xf32>
    %cst_60 = arith.constant 1.000000e+00 : f32
    %92 = vector.broadcast %cst_60 : f32 to vector<8x128xf32>
    %93 = arith.addf %92, %91 : vector<8x128xf32>
    %94 = arith.divf %92, %93 : vector<8x128xf32>
    %c6_61 = arith.constant 6 : index
    %c0_62 = arith.constant 0 : index
    %c0_63 = arith.constant 0 : index
    %95 = vector.load %arg10[%c6_61, %c0_62, %c0_63] : memref<8x8x128xf32, #tpu.memory_space<vmem>>, vector<1x8x128xf32>
    %96 = vector.shape_cast %95 : vector<1x8x128xf32> to vector<8x128xf32>
    %97 = vector.shape_cast %94 : vector<8x128xf32> to vector<1x8x128xf32>
    tpu.vector_store %arg10[%c6_61, %c0_62, %c0_63], %97 {strides = array<i32>} : memref<8x8x128xf32, #tpu.memory_space<vmem>>, vector<1x8x128xf32>,
    %cst_64 = arith.constant dense<0.000000e+00> : vector<8x128xf32>
    %98 = tpu.matmul %94, %12, %cst_64 {dimension_numbers = #tpu.dot_dimension_numbers<[1], [0], [0], [1], [0, 0, 1, 1], [], []>} : vector<8x128xf32>, vector<128x128xf32>, vector<8x128xf32> -> vector<8x128xf32>
    %c7 = arith.constant 7 : index
    %c0_65 = arith.constant 0 : index
    %c0_66 = arith.constant 0 : index
    %99 = vector.load %arg10[%c7, %c0_65, %c0_66] : memref<8x8x128xf32, #tpu.memory_space<vmem>>, vector<1x8x128xf32>
    %100 = vector.shape_cast %99 : vector<1x8x128xf32> to vector<8x128xf32>
    %101 = arith.addf %98, %100 : vector<8x128xf32>
    %102 = arith.negf %101 : vector<8x128xf32>
    %103 = math.exp %102 : vector<8x128xf32>
    %cst_67 = arith.constant 1.000000e+00 : f32
    %104 = vector.broadcast %cst_67 : f32 to vector<8x128xf32>
    %105 = arith.addf %104, %103 : vector<8x128xf32>
    %106 = arith.divf %104, %105 : vector<8x128xf32>
    %c7_68 = arith.constant 7 : index
    %c0_69 = arith.constant 0 : index
    %c0_70 = arith.constant 0 : index
    %107 = vector.load %arg10[%c7_68, %c0_69, %c0_70] : memref<8x8x128xf32, #tpu.memory_space<vmem>>, vector<1x8x128xf32>
    %108 = vector.shape_cast %107 : vector<1x8x128xf32> to vector<8x128xf32>
    %109 = vector.shape_cast %106 : vector<8x128xf32> to vector<1x8x128xf32>
    tpu.vector_store %arg10[%c7_68, %c0_69, %c0_70], %109 {strides = array<i32>} : memref<8x8x128xf32, #tpu.memory_space<vmem>>, vector<1x8x128xf32>,
    %c0_71 = arith.constant 0 : index
    %c0_72 = arith.constant 0 : index
    %110 = vector.load %arg9[%c0_71, %c0_72] : memref<8x128xf32, #tpu.memory_space<vmem>>, vector<8x128xf32>
    tpu.vector_store %arg9[%c0_71, %c0_72], %106 {strides = array<i32>} : memref<8x128xf32, #tpu.memory_space<vmem>>, vector<8x128xf32>,
    %c0_73 = arith.constant 0 : index
    %c0_74 = arith.constant 0 : index
    %c0_75 = arith.constant 0 : index
    %111 = vector.load %arg10[%c0_73, %c0_74, %c0_75] : memref<8x8x128xf32, #tpu.memory_space<vmem>>, vector<8x8x128xf32>
    %112 = vector.shape_cast %111 : vector<8x8x128xf32> to vector<64x128xf32>
    %c0_76 = arith.constant 0 : index
    %c0_77 = arith.constant 0 : index
    %113 = vector.load %arg5[%c0_76, %c0_77] : memref<128x128xf32, #tpu.memory_space<vmem>>, vector<128x128xf32>
    %cst_78 = arith.constant dense<0.000000e+00> : vector<64x128xf32>
    %114 = tpu.matmul %112, %113, %cst_78 {dimension_numbers = #tpu.dot_dimension_numbers<[1], [0], [0], [1], [0, 0, 1, 1], [], []>} : vector<64x128xf32>, vector<128x128xf32>, vector<64x128xf32> -> vector<64x128xf32>
    %c0_79 = arith.constant 0 : index
    %c0_80 = arith.constant 0 : index
    %115 = vector.load %arg7[%c0_79, %c0_80] : memref<1x128xf32, #tpu.memory_space<vmem>>, vector<1x128xf32>
    %116 = vector.broadcast %115 : vector<1x128xf32> to vector<64x128xf32>
    %117 = arith.addf %114, %116 : vector<64x128xf32>
    %118 = vector.shape_cast %117 : vector<64x128xf32> to vector<8x8x128xf32>
    %c0_81 = arith.constant 0 : index
    %c0_82 = arith.constant 0 : index
    %c0_83 = arith.constant 0 : index
    %119 = vector.load %arg8[%c0_81, %c0_82, %c0_83] : memref<8x8x128xf32, #tpu.memory_space<vmem>>, vector<8x8x128xf32>
    tpu.vector_store %arg8[%c0_81, %c0_82, %c0_83], %118 {strides = array<i32>} : memref<8x8x128xf32, #tpu.memory_space<vmem>>, vector<8x8x128xf32>,
    return
  }
  func.func @transform_0(%arg0: i32, %arg1: i32) -> (i32, i32, i32) {
    %c0_i32 = arith.constant 0 : i32
    %c0_i32_0 = arith.constant 0 : i32
    return %arg1, %arg0, %c0_i32 : i32, i32, i32
  }
  func.func @transform_1(%arg0: i32, %arg1: i32) -> (i32, i32) {
    %c0_i32 = arith.constant 0 : i32
    %c0_i32_0 = arith.constant 0 : i32
    %c0_i32_1 = arith.constant 0 : i32
    return %c0_i32, %c0_i32_0 : i32, i32
  }
  func.func @transform_2(%arg0: i32, %arg1: i32) -> (i32, i32) {
    %c0_i32 = arith.constant 0 : i32
    %c0_i32_0 = arith.constant 0 : i32
    %c0_i32_1 = arith.constant 0 : i32
    return %c0_i32, %c0_i32_0 : i32, i32
  }
  func.func @transform_3(%arg0: i32, %arg1: i32) -> (i32, i32) {
    %c0_i32 = arith.constant 0 : i32
    %c0_i32_0 = arith.constant 0 : i32
    %c0_i32_1 = arith.constant 0 : i32
    return %c0_i32, %c0_i32_0 : i32, i32
  }
  func.func @transform_4(%arg0: i32, %arg1: i32) -> (i32, i32) {
    %c0_i32 = arith.constant 0 : i32
    %c0_i32_0 = arith.constant 0 : i32
    %c0_i32_1 = arith.constant 0 : i32
    return %c0_i32, %c0_i32_0 : i32, i32
  }
  func.func @transform_5(%arg0: i32, %arg1: i32) -> (i32, i32) {
    %c0_i32 = arith.constant 0 : i32
    %c0_i32_0 = arith.constant 0 : i32
    %c0_i32_1 = arith.constant 0 : i32
    return %c0_i32, %c0_i32_0 : i32, i32
  }
  func.func @transform_6(%arg0: i32, %arg1: i32) -> (i32, i32, i32) {
    %c0_i32 = arith.constant 0 : i32
    %c0_i32_0 = arith.constant 0 : i32
    return %arg1, %arg0, %c0_i32 : i32, i32, i32
  }
}

</mosaic_0001>

<llo_original>
// kernel: tpu_custom_call.1
$region0: #{tpu_custom_call.1}
  #allocation0 [shape = 'u32[]', space=smem, size = 0x4, offset = 0x4, fixed_abs, tag = 'smem constant byte address 0x4 - core index']
  #allocation1 [shape = 'u32[144,128]{1,0:T(1,128)}', space=vmem, size = 0x12000, scoped, tag = 'internal scratch']
  #allocation2 [shape = 'f32[8,128]{1,0:T(8,128)}', space=vmem, size = 0x1000, scoped, tag = 'scratch operand']
  #allocation3 [shape = 'f32[8,8,128]{2,1,0:T(8,128)}', space=vmem, size = 0x8000, scoped, tag = 'scratch operand']
  %s0 = inlined_call_operand.vmem [shape: f32[8,8,4], index: 0, kind: input, shape index: {}]
  %s1 = inlined_call_operand.hbm [shape: f32[128,128], index: 1, kind: input, shape index: {}]
  %s2 = inlined_call_operand.vmem [shape: f32[4,128], index: 2, kind: input, shape index: {}]
  %s3 = inlined_call_operand.hbm [shape: f32[128,128], index: 3, kind: input, shape index: {}]
  %s4 = inlined_call_operand.vmem [shape: f32[1,128], index: 4, kind: input, shape index: {}]
  %s5 = inlined_call_operand.vmem [shape: f32[1,128], index: 5, kind: input, shape index: {}]
  %s6 = inlined_call_operand.hbm [shape: f32[8,8,128], index: 6, kind: output, shape index: {}]
  %s7 = sld [smem:[#allocation0]]
  $region46: #{tpu_custom_call.1} parent=0
    _
  %s9 = ssub.s32 1, %s7
  %s10 = scalar_select 0, %s9, %s7
  $region1: #{tpu_custom_call.1} parent=0
    #allocation4 [shape = 'u8[65536]{0}', space=vmem, size = 0x10000, scoped, tag = 'input window, operand 1, single buffered']
    #allocation5 [shape = 's32[1]{0}', space=sflag, size = 0x4, scoped, tag = 'scoped memory for tpu_custom_call.1']
    #allocation6 [shape = 's32[1]{0}', space=sflag, size = 0x4, scoped, tag = 'scoped memory for tpu_custom_call.1']
    #allocation7 [shape = 'u8[65536]{0}', space=vmem, size = 0x10000, scoped, tag = 'input window, operand 3, single buffered']
    #allocation8 [shape = 's32[1]{0}', space=sflag, size = 0x4, scoped, tag = 'scoped memory for tpu_custom_call.1']
    #allocation9 [shape = 'u8[32768]{0}', space=vmem, size = 0x8000, scoped, tag = 'output window, operand 0, single buffered']
    %11 = vsyncpa [#allocation5], 0
    %12 = vsyncpa [#allocation8], 0
    %13 = vsyncpa [#allocation6], 0
    // Predicated region
    $region2: #{tpu_custom_call.1} parent=1 // pred_check
      _
    $region3: #{tpu_custom_call.1} parent=1 // pred_check_branch
      %15 = sbr.rel (0) target = $region5
    $region4: #{tpu_custom_call.1} parent=1 // pred_region
      _
    $region5: #{tpu_custom_call.1} parent=1 // pred_fallthru
      _
    // Predicated region
    $region6: #{tpu_custom_call.1} parent=1 // pred_check
      _
    $region7: #{tpu_custom_call.1} parent=1 // pred_check_branch
      %17 = sbr.rel (0) target = $region9
    $region8: #{tpu_custom_call.1} parent=1 // pred_region
      %s19 = ssub.s32 2048, 2048
      %20 = vsyncadd [#allocation5], %s19
      %s21 = sshll.u32 [#allocation4], 4
      %s22 = int_to_ptr.vmem [resolvable:$true] %s21
      %27 = dma.hbm_to_vmem [thread:$0]  %s1, 2048, %s22, [#allocation5], 128, 128, 8
    $region9: #{tpu_custom_call.1} parent=1 // pred_fallthru
      _
    // Predicated region
    $region10: #{tpu_custom_call.1} parent=1 // pred_check
      _
    $region11: #{tpu_custom_call.1} parent=1 // pred_check_branch
      %29 = sbr.rel (0) target = $region13
    $region12: #{tpu_custom_call.1} parent=1 // pred_region
      _
    $region13: #{tpu_custom_call.1} parent=1 // pred_fallthru
      _
    // Predicated region
    $region14: #{tpu_custom_call.1} parent=1 // pred_check
      _
    $region15: #{tpu_custom_call.1} parent=1 // pred_check_branch
      %31 = sbr.rel (0) target = $region17
    $region16: #{tpu_custom_call.1} parent=1 // pred_region
      %s33 = ssub.s32 2048, 2048
      %34 = vsyncadd [#allocation8], %s33
      %s35 = sshll.u32 [#allocation7], 4
      %s36 = int_to_ptr.vmem [resolvable:$true] %s35
      %41 = dma.hbm_to_vmem [thread:$0]  %s3, 2048, %s36, [#allocation8], 128, 128, 8
    $region17: #{tpu_custom_call.1} parent=1 // pred_fallthru
      _
    // Predicated region
    $region18: #{tpu_custom_call.1} parent=1 // pred_check
      _
    $region19: #{tpu_custom_call.1} parent=1 // pred_check_branch
      %43 = sbr.rel (0) target = $region21
    $region20: #{tpu_custom_call.1} parent=1 // pred_region
      _
    $region21: #{tpu_custom_call.1} parent=1 // pred_fallthru
      _
    // Predicated region
    $region22: #{tpu_custom_call.1} parent=1 // pred_check
      _
    $region23: #{tpu_custom_call.1} parent=1 // pred_check_branch
      %45 = sbr.rel (0) target = $region25
    $region24: #{tpu_custom_call.1} parent=1 // pred_region
      _
    $region25: #{tpu_custom_call.1} parent=1 // pred_fallthru
      _
    // Predicated region
    $region26: #{tpu_custom_call.1} parent=1 // pred_check
      _
    $region27: #{tpu_custom_call.1} parent=1 // pred_check_branch
      %47 = sbr.rel (0) target = $region29
    $region28: #{tpu_custom_call.1} parent=1 // pred_region
      %48 = dma.done [#allocation5], 2048
    $region29: #{tpu_custom_call.1} parent=1 // pred_fallthru
      _
    // Predicated region
    $region30: #{tpu_custom_call.1} parent=1 // pred_check
      _
    $region31: #{tpu_custom_call.1} parent=1 // pred_check_branch
      %50 = sbr.rel (0) target = $region33
    $region32: #{tpu_custom_call.1} parent=1 // pred_region
      %51 = dma.done [#allocation8], 2048
    $region33: #{tpu_custom_call.1} parent=1 // pred_fallthru
      _
    %p52 = scmp.eq.s32.totalorder 0, 0
    // Predicated region
    $region34: #{tpu_custom_call.1} parent=1 // pred_check
      %p53 = pneg %p52
    $region35: #{tpu_custom_call.1} parent=1 // pred_check_branch
      %55 = sbr.rel (%p53) target = $region37
    $region36: #{tpu_custom_call.1} parent=1 // pred_region
      %56 = vst [vmem:[#allocation2] sm:$0xff] 0.0
    $region37: #{tpu_custom_call.1} parent=1 // pred_fallthru
      _
    %v57 = vld [vmem:[%s0] sm:$0xff]
    %v58 = vld [vmem:[%s0 + $0x8] sm:$0xff]
    %v59 = vld [vmem:[%s0 + $0x10] sm:$0xff]
    %v60 = vld [vmem:[%s0 + $0x18] sm:$0xff]
    %v61 = vld [vmem:[%s0 + $0x20] sm:$0xff]
    %v62 = vld [vmem:[%s0 + $0x28] sm:$0xff]
    %v63 = vld [vmem:[%s0 + $0x30] sm:$0xff]
    %v64 = vld [vmem:[%s0 + $0x38] sm:$0xff]
    %v65 = vld [vmem:[%s2] sm:$0xf]
    %v66 = vld [vmem:[%s4] sm:$0x1]
    %v68 = vlaneseq
    %v69 = vshrl.u32 %v68, 7
    %v70 = vsub.s32 0, %v69
    %v71 = vrot.slane %v66, %v70
    %vm73 = vcmask 31744
    %v75 = vsel %vm73, %v57, 0
    %v78 = vsel %vm73, %v58, 0
    %v81 = vsel %vm73, %v59, 0
    %v84 = vsel %vm73, %v60, 0
    %v87 = vsel %vm73, %v61, 0
    %v90 = vsel %vm73, %v62, 0
    %v93 = vsel %vm73, %v63, 0
    %v96 = vsel %vm73, %v64, 0
    %vm98 = vcmask 1043456
    %v100 = vsel %vm98, %v65, 0
    %102 = vmatprep.subr.mxu0 0.0
    %103 = vmatpush1.msra.mxu0 0.0
    %104 = vmatprep.subr.mxu0 0.0
    %105 = vmatpush1.msra.mxu0 0.0
    %106 = vmatprep.subr.mxu0 0.0
    %107 = vmatpush1.msra.mxu0 0.0
    %108 = vmatprep.subr.mxu0 0.0
    %109 = vmatpush1.msra.mxu0 0.0
    %110 = vmatprep.subr.mxu0 0.0
    %111 = vmatpush1.msra.mxu0 0.0
    %112 = vmatprep.subr.mxu0 0.0
    %113 = vmatpush1.msra.mxu0 0.0
    %114 = vmatprep.subr.mxu0 0.0
    %115 = vmatpush1.msra.mxu0 0.0
    %116 = vmatprep.subr.mxu0 0.0
    %117 = vmatpush1.msra.mxu0 0.0
    %118 = vmatprep.subr.mxu0 0.0
    %119 = vmatpush1.msra.mxu0 0.0
    %120 = vmatprep.subr.mxu0 0.0
    %121 = vmatpush1.msra.mxu0 0.0
    %122 = vmatprep.subr.mxu0 0.0
    %123 = vmatpush1.msra.mxu0 0.0
    %124 = vmatprep.subr.mxu0 0.0
    %125 = vmatpush1.msra.mxu0 0.0
    %126 = vmatprep.subr.mxu0 0.0
    %127 = vmatpush1.msra.mxu0 0.0
    %128 = vmatprep.subr.mxu0 0.0
    %129 = vmatpush1.msra.mxu0 0.0
    %130 = vmatprep.subr.mxu0 0.0
    %131 = vmatpush1.msra.mxu0 0.0
    %132 = vmatprep.subr.mxu0 0.0
    %133 = vmatpush1.msra.mxu0 %v100
    %134 = vmatprep.subr.mxu0 0.0
    %135 = vmatpush2.msra.mxu0 0.0
    %136 = vmatprep.subr.mxu0 0.0
    %137 = vmatpush2.msra.mxu0 0.0
    %138 = vmatprep.subr.mxu0 0.0
    %139 = vmatpush2.msra.mxu0 0.0
    %140 = vmatprep.subr.mxu0 0.0
    %141 = vmatpush2.msra.mxu0 0.0
    %142 = vmatprep.subr.mxu0 0.0
    %143 = vmatpush2.msra.mxu0 0.0
    %144 = vmatprep.subr.mxu0 0.0
    %145 = vmatpush2.msra.mxu0 0.0
    %146 = vmatprep.subr.mxu0 0.0
    %147 = vmatpush2.msra.mxu0 0.0
    %148 = vmatprep.subr.mxu0 0.0
    %149 = vmatpush2.msra.mxu0 0.0
    %150 = vmatprep.subr.mxu0 0.0
    %151 = vmatpush2.msra.mxu0 0.0
    %152 = vmatprep.subr.mxu0 0.0
    %153 = vmatpush2.msra.mxu0 0.0
    %154 = vmatprep.subr.mxu0 0.0
    %155 = vmatpush2.msra.mxu0 0.0
    %156 = vmatprep.subr.mxu0 0.0
    %157 = vmatpush2.msra.mxu0 0.0
    %158 = vmatprep.subr.mxu0 0.0
    %159 = vmatpush2.msra.mxu0 0.0
    %160 = vmatprep.subr.mxu0 0.0
    %161 = vmatpush2.msra.mxu0 0.0
    %162 = vmatprep.subr.mxu0 0.0
    %163 = vmatpush2.msra.mxu0 0.0
    %164 = vmatprep.subr.mxu0 0.0
    %165 = vmatpush2.msra.mxu0 0.0
    %166 = vmatprep.mubr.f32.mxu0 0.0
    %167 = vmatmul.mubr.f32.gmra.mxu0 %v75
    %v168 = vpop.f32.mrf.mxu0
    %v169 = vadd.f32 %v71, %v168
    %v170 = vpop.f32.mrf.mxu0
    %171 = vmatprep.mubr.f32.mxu0 0.0
    %172 = vmatmul.mubr.f32.gmra.mxu0 %v78
    %v173 = vpop.f32.mrf.mxu0
    %v174 = vadd.f32 %v71, %v173
    %v175 = vpop.f32.mrf.mxu0
    %176 = vmatprep.mubr.f32.mxu0 0.0
    %177 = vmatmul.mubr.f32.gmra.mxu0 %v81
    %v178 = vpop.f32.mrf.mxu0
    %v179 = vadd.f32 %v71, %v178
    %v180 = vpop.f32.mrf.mxu0
    %181 = vmatprep.mubr.f32.mxu0 0.0
    %182 = vmatmul.mubr.f32.gmra.mxu0 %v84
    %v183 = vpop.f32.mrf.mxu0
    %v184 = vadd.f32 %v71, %v183
    %v185 = vpop.f32.mrf.mxu0
    %186 = vmatprep.mubr.f32.mxu0 0.0
    %187 = vmatmul.mubr.f32.gmra.mxu0 %v87
    %v188 = vpop.f32.mrf.mxu0
    %v189 = vadd.f32 %v71, %v188
    %v190 = vpop.f32.mrf.mxu0
    %191 = vmatprep.mubr.f32.mxu0 0.0
    %192 = vmatmul.mubr.f32.gmra.mxu0 %v90
    %v193 = vpop.f32.mrf.mxu0
    %v194 = vadd.f32 %v71, %v193
    %v195 = vpop.f32.mrf.mxu0
    %196 = vmatprep.mubr.f32.mxu0 0.0
    %197 = vmatmul.mubr.f32.gmra.mxu0 %v93
    %v198 = vpop.f32.mrf.mxu0
    %v199 = vadd.f32 %v71, %v198
    %v200 = vpop.f32.mrf.mxu0
    %201 = vmatprep.mubr.f32.mxu0 0.0
    %202 = vmatmul.mubr.f32.gmra.mxu0 %v96
    %v203 = vpop.f32.mrf.mxu0
    %v204 = vadd.f32 %v71, %v203
    %v205 = vpop.f32.mrf.mxu0
    %206 = vdwg.mxu0
    %207 = vst [vmem:[#allocation3] sm:$0xff] %v169
    %208 = vst [vmem:[#allocation3 + $0x8] sm:$0xff] %v174
    %209 = vst [vmem:[#allocation3 + $0x10] sm:$0xff] %v179
    %210 = vst [vmem:[#allocation3 + $0x18] sm:$0xff] %v184
    %211 = vst [vmem:[#allocation3 + $0x20] sm:$0xff] %v189
    %212 = vst [vmem:[#allocation3 + $0x28] sm:$0xff] %v194
    %213 = vst [vmem:[#allocation3 + $0x30] sm:$0xff] %v199
    %214 = vst [vmem:[#allocation3 + $0x38] sm:$0xff] %v204
    %v215 = vld [vmem:[#allocation4] sm:$0xff]
    %v216 = vld [vmem:[#allocation4 + $0x8] sm:$0xff]
    %v217 = vld [vmem:[#allocation4 + $0x10] sm:$0xff]
    %v218 = vld [vmem:[#allocation4 + $0x18] sm:$0xff]
    %v219 = vld [vmem:[#allocation4 + $0x20] sm:$0xff]
    %v220 = vld [vmem:[#allocation4 + $0x28] sm:$0xff]
    %v221 = vld [vmem:[#allocation4 + $0x30] sm:$0xff]
    %v222 = vld [vmem:[#allocation4 + $0x38] sm:$0xff]
    %v223 = vld [vmem:[#allocation4 + $0x40] sm:$0xff]
    %v224 = vld [vmem:[#allocation4 + $0x48] sm:$0xff]
    %v225 = vld [vmem:[#allocation4 + $0x50] sm:$0xff]
    %v226 = vld [vmem:[#allocation4 + $0x58] sm:$0xff]
    %v227 = vld [vmem:[#allocation4 + $0x60] sm:$0xff]
    %v228 = vld [vmem:[#allocation4 + $0x68] sm:$0xff]
    %v229 = vld [vmem:[#allocation4 + $0x70] sm:$0xff]
    %v230 = vld [vmem:[#allocation4 + $0x78] sm:$0xff]
    %v231 = vld [vmem:[#allocation2] sm:$0xff]
    %v232 = vld [vmem:[#allocation3] sm:$0xff]
    %233 = vmatprep.subr.mxu0 0.0
    %234 = vmatpush1.msra.mxu0 %v230
    %235 = vmatprep.subr.mxu0 0.0
    %236 = vmatpush1.msra.mxu0 %v229
    %237 = vmatprep.subr.mxu0 0.0
    %238 = vmatpush1.msra.mxu0 %v228
    %239 = vmatprep.subr.mxu0 0.0
    %240 = vmatpush1.msra.mxu0 %v227
    %241 = vmatprep.subr.mxu0 0.0
    %242 = vmatpush1.msra.mxu0 %v226
    %243 = vmatprep.subr.mxu0 0.0
    %244 = vmatpush1.msra.mxu0 %v225
    %245 = vmatprep.subr.mxu0 0.0
    %246 = vmatpush1.msra.mxu0 %v224
    %247 = vmatprep.subr.mxu0 0.0
    %248 = vmatpush1.msra.mxu0 %v223
    %249 = vmatprep.subr.mxu0 0.0
    %250 = vmatpush1.msra.mxu0 %v222
    %251 = vmatprep.subr.mxu0 0.0
    %252 = vmatpush1.msra.mxu0 %v221
    %253 = vmatprep.subr.mxu0 0.0
    %254 = vmatpush1.msra.mxu0 %v220
    %255 = vmatprep.subr.mxu0 0.0
    %256 = vmatpush1.msra.mxu0 %v219
    %257 = vmatprep.subr.mxu0 0.0
    %258 = vmatpush1.msra.mxu0 %v218
    %259 = vmatprep.subr.mxu0 0.0
    %260 = vmatpush1.msra.mxu0 %v217
    %261 = vmatprep.subr.mxu0 0.0
    %262 = vmatpush1.msra.mxu0 %v216
    %263 = vmatprep.subr.mxu0 0.0
    %264 = vmatpush1.msra.mxu0 %v215
    %265 = vmatprep.subr.mxu0 0.0
    %266 = vmatpush2.msra.mxu0 0.0
    %267 = vmatprep.subr.mxu0 0.0
    %268 = vmatpush2.msra.mxu0 0.0
    %269 = vmatprep.subr.mxu0 0.0
    %270 = vmatpush2.msra.mxu0 0.0
    %271 = vmatprep.subr.mxu0 0.0
    %272 = vmatpush2.msra.mxu0 0.0
    %273 = vmatprep.subr.mxu0 0.0
    %274 = vmatpush2.msra.mxu0 0.0
    %275 = vmatprep.subr.mxu0 0.0
    %276 = vmatpush2.msra.mxu0 0.0
    %277 = vmatprep.subr.mxu0 0.0
    %278 = vmatpush2.msra.mxu0 0.0
    %279 = vmatprep.subr.mxu0 0.0
    %280 = vmatpush2.msra.mxu0 0.0
    %281 = vmatprep.subr.mxu0 0.0
    %282 = vmatpush2.msra.mxu0 0.0
    %283 = vmatprep.subr.mxu0 0.0
    %284 = vmatpush2.msra.mxu0 0.0
    %285 = vmatprep.subr.mxu0 0.0
    %286 = vmatpush2.msra.mxu0 0.0
    %287 = vmatprep.subr.mxu0 0.0
    %288 = vmatpush2.msra.mxu0 0.0
    %289 = vmatprep.subr.mxu0 0.0
    %290 = vmatpush2.msra.mxu0 0.0
    %291 = vmatprep.subr.mxu0 0.0
    %292 = vmatpush2.msra.mxu0 0.0
    %293 = vmatprep.subr.mxu0 0.0
    %294 = vmatpush2.msra.mxu0 0.0
    %295 = vmatprep.subr.mxu0 0.0
    %296 = vmatpush2.msra.mxu0 0.0
    %297 = vmatprep.mubr.f32.mxu0 0.0
    %298 = vmatmul.mubr.f32.gmra.mxu0 %v231
    %v299 = vpop.f32.mrf.mxu0
    %v300 = vadd.f32 %v232, %v299
    %v301 = vpop.f32.mrf.mxu0
    %302 = vdwg.mxu0
    %v303 = vxor.u32 %v300, 2147483648
    %v304 = vmul.f32 %v303, 1.442695
    %v305 = vpow.pop %v304
    %v306 = vadd.f32 %v305, 1.0
    %v307 = vrcp.pop %v306
    %v308 = vmul.f32 1.0, %v307
    %309 = vst [vmem:[#allocation3] sm:$0xff] %v308
    %s310 = scalar_lea.vmem [#allocation3], 8
    %v311 = vld [vmem:[%s310] sm:$0xff]
    %312 = vmatprep.subr.mxu0 0.0
    %313 = vmatpush1.msra.mxu0 %v230
    %314 = vmatprep.subr.mxu0 0.0
    %315 = vmatpush1.msra.mxu0 %v229
    %316 = vmatprep.subr.mxu0 0.0
    %317 = vmatpush1.msra.mxu0 %v228
    %318 = vmatprep.subr.mxu0 0.0
    %319 = vmatpush1.msra.mxu0 %v227
    %320 = vmatprep.subr.mxu0 0.0
    %321 = vmatpush1.msra.mxu0 %v226
    %322 = vmatprep.subr.mxu0 0.0
    %323 = vmatpush1.msra.mxu0 %v225
    %324 = vmatprep.subr.mxu0 0.0
    %325 = vmatpush1.msra.mxu0 %v224
    %326 = vmatprep.subr.mxu0 0.0
    %327 = vmatpush1.msra.mxu0 %v223
    %328 = vmatprep.subr.mxu0 0.0
    %329 = vmatpush1.msra.mxu0 %v222
    %330 = vmatprep.subr.mxu0 0.0
    %331 = vmatpush1.msra.mxu0 %v221
    %332 = vmatprep.subr.mxu0 0.0
    %333 = vmatpush1.msra.mxu0 %v220
    %334 = vmatprep.subr.mxu0 0.0
    %335 = vmatpush1.msra.mxu0 %v219
    %336 = vmatprep.subr.mxu0 0.0
    %337 = vmatpush1.msra.mxu0 %v218
    %338 = vmatprep.subr.mxu0 0.0
    %339 = vmatpush1.msra.mxu0 %v217
    %340 = vmatprep.subr.mxu0 0.0
    %341 = vmatpush1.msra.mxu0 %v216
    %342 = vmatprep.subr.mxu0 0.0
    %343 = vmatpush1.msra.mxu0 %v215
    %344 = vmatprep.subr.mxu0 0.0
    %345 = vmatpush2.msra.mxu0 0.0
    %346 = vmatprep.subr.mxu0 0.0
    %347 = vmatpush2.msra.mxu0 0.0
    %348 = vmatprep.subr.mxu0 0.0
    %349 = vmatpush2.msra.mxu0 0.0
    %350 = vmatprep.subr.mxu0 0.0
    %351 = vmatpush2.msra.mxu0 0.0
    %352 = vmatprep.subr.mxu0 0.0
    %353 = vmatpush2.msra.mxu0 0.0
    %354 = vmatprep.subr.mxu0 0.0
    %355 = vmatpush2.msra.mxu0 0.0
    %356 = vmatprep.subr.mxu0 0.0
    %357 = vmatpush2.msra.mxu0 0.0
    %358 = vmatprep.subr.mxu0 0.0
    %359 = vmatpush2.msra.mxu0 0.0
    %360 = vmatprep.subr.mxu0 0.0
    %361 = vmatpush2.msra.mxu0 0.0
    %362 = vmatprep.subr.mxu0 0.0
    %363 = vmatpush2.msra.mxu0 0.0
    %364 = vmatprep.subr.mxu0 0.0
    %365 = vmatpush2.msra.mxu0 0.0
    %366 = vmatprep.subr.mxu0 0.0
    %367 = vmatpush2.msra.mxu0 0.0
    %368 = vmatprep.subr.mxu0 0.0
    %369 = vmatpush2.msra.mxu0 0.0
    %370 = vmatprep.subr.mxu0 0.0
    %371 = vmatpush2.msra.mxu0 0.0
    %372 = vmatprep.subr.mxu0 0.0
    %373 = vmatpush2.msra.mxu0 0.0
    %374 = vmatprep.subr.mxu0 0.0
    %375 = vmatpush2.msra.mxu0 0.0
    %376 = vmatprep.mubr.f32.mxu0 0.0
    %377 = vmatmul.mubr.f32.gmra.mxu0 %v308
    %v378 = vpop.f32.mrf.mxu0
    %v379 = vadd.f32 %v311, %v378
    %v380 = vpop.f32.mrf.mxu0
    %381 = vdwg.mxu0
    %v382 = vxor.u32 %v379, 2147483648
    %v383 = vmul.f32 %v382, 1.442695
    %v384 = vpow.pop %v383
    %v385 = vadd.f32 %v384, 1.0
    %v386 = vrcp.pop %v385
    %v387 = vmul.f32 1.0, %v386
    %388 = vst [vmem:[%s310] sm:$0xff] %v387
    %s389 = scalar_lea.vmem [#allocation3], 16
    %v390 = vld [vmem:[%s389] sm:$0xff]
    %391 = vmatprep.subr.mxu0 0.0
    %392 = vmatpush1.msra.mxu0 %v230
    %393 = vmatprep.subr.mxu0 0.0
    %394 = vmatpush1.msra.mxu0 %v229
    %395 = vmatprep.subr.mxu0 0.0
    %396 = vmatpush1.msra.mxu0 %v228
    %397 = vmatprep.subr.mxu0 0.0
    %398 = vmatpush1.msra.mxu0 %v227
    %399 = vmatprep.subr.mxu0 0.0
    %400 = vmatpush1.msra.mxu0 %v226
    %401 = vmatprep.subr.mxu0 0.0
    %402 = vmatpush1.msra.mxu0 %v225
    %403 = vmatprep.subr.mxu0 0.0
    %404 = vmatpush1.msra.mxu0 %v224
    %405 = vmatprep.subr.mxu0 0.0
    %406 = vmatpush1.msra.mxu0 %v223
    %407 = vmatprep.subr.mxu0 0.0
    %408 = vmatpush1.msra.mxu0 %v222
    %409 = vmatprep.subr.mxu0 0.0
    %410 = vmatpush1.msra.mxu0 %v221
    %411 = vmatprep.subr.mxu0 0.0
    %412 = vmatpush1.msra.mxu0 %v220
    %413 = vmatprep.subr.mxu0 0.0
    %414 = vmatpush1.msra.mxu0 %v219
    %415 = vmatprep.subr.mxu0 0.0
    %416 = vmatpush1.msra.mxu0 %v218
    %417 = vmatprep.subr.mxu0 0.0
    %418 = vmatpush1.msra.mxu0 %v217
    %419 = vmatprep.subr.mxu0 0.0
    %420 = vmatpush1.msra.mxu0 %v216
    %421 = vmatprep.subr.mxu0 0.0
    %422 = vmatpush1.msra.mxu0 %v215
    %423 = vmatprep.subr.mxu0 0.0
    %424 = vmatpush2.msra.mxu0 0.0
    %425 = vmatprep.subr.mxu0 0.0
    %426 = vmatpush2.msra.mxu0 0.0
    %427 = vmatprep.subr.mxu0 0.0
    %428 = vmatpush2.msra.mxu0 0.0
    %429 = vmatprep.subr.mxu0 0.0
    %430 = vmatpush2.msra.mxu0 0.0
    %431 = vmatprep.subr.mxu0 0.0
    %432 = vmatpush2.msra.mxu0 0.0
    %433 = vmatprep.subr.mxu0 0.0
    %434 = vmatpush2.msra.mxu0 0.0
    %435 = vmatprep.subr.mxu0 0.0
    %436 = vmatpush2.msra.mxu0 0.0
    %437 = vmatprep.subr.mxu0 0.0
    %438 = vmatpush2.msra.mxu0 0.0
    %439 = vmatprep.subr.mxu0 0.0
    %440 = vmatpush2.msra.mxu0 0.0
    %441 = vmatprep.subr.mxu0 0.0
    %442 = vmatpush2.msra.mxu0 0.0
    %443 = vmatprep.subr.mxu0 0.0
    %444 = vmatpush2.msra.mxu0 0.0
    %445 = vmatprep.subr.mxu0 0.0
    %446 = vmatpush2.msra.mxu0 0.0
    %447 = vmatprep.subr.mxu0 0.0
    %448 = vmatpush2.msra.mxu0 0.0
    %449 = vmatprep.subr.mxu0 0.0
    %450 = vmatpush2.msra.mxu0 0.0
    %451 = vmatprep.subr.mxu0 0.0
    %452 = vmatpush2.msra.mxu0 0.0
    %453 = vmatprep.subr.mxu0 0.0
    %454 = vmatpush2.msra.mxu0 0.0
    %455 = vmatprep.mubr.f32.mxu0 0.0
    %456 = vmatmul.mubr.f32.gmra.mxu0 %v387
    %v457 = vpop.f32.mrf.mxu0
    %v458 = vadd.f32 %v390, %v457
    %v459 = vpop.f32.mrf.mxu0
    %460 = vdwg.mxu0
    %v461 = vxor.u32 %v458, 2147483648
    %v462 = vmul.f32 %v461, 1.442695
    %v463 = vpow.pop %v462
    %v464 = vadd.f32 %v463, 1.0
    %v465 = vrcp.pop %v464
    %v466 = vmul.f32 1.0, %v465
    %467 = vst [vmem:[%s389] sm:$0xff] %v466
    %s468 = scalar_lea.vmem [#allocation3], 24
    %v469 = vld [vmem:[%s468] sm:$0xff]
    %470 = vmatprep.subr.mxu0 0.0
    %471 = vmatpush1.msra.mxu0 %v230
    %472 = vmatprep.subr.mxu0 0.0
    %473 = vmatpush1.msra.mxu0 %v229
    %474 = vmatprep.subr.mxu0 0.0
    %475 = vmatpush1.msra.mxu0 %v228
    %476 = vmatprep.subr.mxu0 0.0
    %477 = vmatpush1.msra.mxu0 %v227
    %478 = vmatprep.subr.mxu0 0.0
    %479 = vmatpush1.msra.mxu0 %v226
    %480 = vmatprep.subr.mxu0 0.0
    %481 = vmatpush1.msra.mxu0 %v225
    %482 = vmatprep.subr.mxu0 0.0
    %483 = vmatpush1.msra.mxu0 %v224
    %484 = vmatprep.subr.mxu0 0.0
    %485 = vmatpush1.msra.mxu0 %v223
    %486 = vmatprep.subr.mxu0 0.0
    %487 = vmatpush1.msra.mxu0 %v222
    %488 = vmatprep.subr.mxu0 0.0
    %489 = vmatpush1.msra.mxu0 %v221
    %490 = vmatprep.subr.mxu0 0.0
    %491 = vmatpush1.msra.mxu0 %v220
    %492 = vmatprep.subr.mxu0 0.0
    %493 = vmatpush1.msra.mxu0 %v219
    %494 = vmatprep.subr.mxu0 0.0
    %495 = vmatpush1.msra.mxu0 %v218
    %496 = vmatprep.subr.mxu0 0.0
    %497 = vmatpush1.msra.mxu0 %v217
    %498 = vmatprep.subr.mxu0 0.0
    %499 = vmatpush1.msra.mxu0 %v216
    %500 = vmatprep.subr.mxu0 0.0
    %501 = vmatpush1.msra.mxu0 %v215
    %502 = vmatprep.subr.mxu0 0.0
    %503 = vmatpush2.msra.mxu0 0.0
    %504 = vmatprep.subr.mxu0 0.0
    %505 = vmatpush2.msra.mxu0 0.0
    %506 = vmatprep.subr.mxu0 0.0
    %507 = vmatpush2.msra.mxu0 0.0
    %508 = vmatprep.subr.mxu0 0.0
    %509 = vmatpush2.msra.mxu0 0.0
    %510 = vmatprep.subr.mxu0 0.0
    %511 = vmatpush2.msra.mxu0 0.0
    %512 = vmatprep.subr.mxu0 0.0
    %513 = vmatpush2.msra.mxu0 0.0
    %514 = vmatprep.subr.mxu0 0.0
    %515 = vmatpush2.msra.mxu0 0.0
    %516 = vmatprep.subr.mxu0 0.0
    %517 = vmatpush2.msra.mxu0 0.0
    %518 = vmatprep.subr.mxu0 0.0
    %519 = vmatpush2.msra.mxu0 0.0
    %520 = vmatprep.subr.mxu0 0.0
    %521 = vmatpush2.msra.mxu0 0.0
    %522 = vmatprep.subr.mxu0 0.0
    %523 = vmatpush2.msra.mxu0 0.0
    %524 = vmatprep.subr.mxu0 0.0
    %525 = vmatpush2.msra.mxu0 0.0
    %526 = vmatprep.subr.mxu0 0.0
    %527 = vmatpush2.msra.mxu0 0.0
    %528 = vmatprep.subr.mxu0 0.0
    %529 = vmatpush2.msra.mxu0 0.0
    %530 = vmatprep.subr.mxu0 0.0
    %531 = vmatpush2.msra.mxu0 0.0
    %532 = vmatprep.subr.mxu0 0.0
    %533 = vmatpush2.msra.mxu0 0.0
    %534 = vmatprep.mubr.f32.mxu0 0.0
    %535 = vmatmul.mubr.f32.gmra.mxu0 %v466
    %v536 = vpop.f32.mrf.mxu0
    %v537 = vadd.f32 %v469, %v536
    %v538 = vpop.f32.mrf.mxu0
    %539 = vdwg.mxu0
    %v540 = vxor.u32 %v537, 2147483648
    %v541 = vmul.f32 %v540, 1.442695
    %v542 = vpow.pop %v541
    %v543 = vadd.f32 %v542, 1.0
    %v544 = vrcp.pop %v543
    %v545 = vmul.f32 1.0, %v544
    %546 = vst [vmem:[%s468] sm:$0xff] %v545
    %s547 = scalar_lea.vmem [#allocation3], 32
    %v548 = vld [vmem:[%s547] sm:$0xff]
    %549 = vmatprep.subr.mxu0 0.0
    %550 = vmatpush1.msra.mxu0 %v230
    %551 = vmatprep.subr.mxu0 0.0
    %552 = vmatpush1.msra.mxu0 %v229
    %553 = vmatprep.subr.mxu0 0.0
    %554 = vmatpush1.msra.mxu0 %v228
    %555 = vmatprep.subr.mxu0 0.0
    %556 = vmatpush1.msra.mxu0 %v227
    %557 = vmatprep.subr.mxu0 0.0
    %558 = vmatpush1.msra.mxu0 %v226
    %559 = vmatprep.subr.mxu0 0.0
    %560 = vmatpush1.msra.mxu0 %v225
    %561 = vmatprep.subr.mxu0 0.0
    %562 = vmatpush1.msra.mxu0 %v224
    %563 = vmatprep.subr.mxu0 0.0
    %564 = vmatpush1.msra.mxu0 %v223
    %565 = vmatprep.subr.mxu0 0.0
    %566 = vmatpush1.msra.mxu0 %v222
    %567 = vmatprep.subr.mxu0 0.0
    %568 = vmatpush1.msra.mxu0 %v221
    %569 = vmatprep.subr.mxu0 0.0
    %570 = vmatpush1.msra.mxu0 %v220
    %571 = vmatprep.subr.mxu0 0.0
    %572 = vmatpush1.msra.mxu0 %v219
    %573 = vmatprep.subr.mxu0 0.0
    %574 = vmatpush1.msra.mxu0 %v218
    %575 = vmatprep.subr.mxu0 0.0
    %576 = vmatpush1.msra.mxu0 %v217
    %577 = vmatprep.subr.mxu0 0.0
    %578 = vmatpush1.msra.mxu0 %v216
    %579 = vmatprep.subr.mxu0 0.0
    %580 = vmatpush1.msra.mxu0 %v215
    %581 = vmatprep.subr.mxu0 0.0
    %582 = vmatpush2.msra.mxu0 0.0
    %583 = vmatprep.subr.mxu0 0.0
    %584 = vmatpush2.msra.mxu0 0.0
    %585 = vmatprep.subr.mxu0 0.0
    %586 = vmatpush2.msra.mxu0 0.0
    %587 = vmatprep.subr.mxu0 0.0
    %588 = vmatpush2.msra.mxu0 0.0
    %589 = vmatprep.subr.mxu0 0.0
    %590 = vmatpush2.msra.mxu0 0.0
    %591 = vmatprep.subr.mxu0 0.0
    %592 = vmatpush2.msra.mxu0 0.0
    %593 = vmatprep.subr.mxu0 0.0
    %594 = vmatpush2.msra.mxu0 0.0
    %595 = vmatprep.subr.mxu0 0.0
    %596 = vmatpush2.msra.mxu0 0.0
    %597 = vmatprep.subr.mxu0 0.0
    %598 = vmatpush2.msra.mxu0 0.0
    %599 = vmatprep.subr.mxu0 0.0
    %600 = vmatpush2.msra.mxu0 0.0
    %601 = vmatprep.subr.mxu0 0.0
    %602 = vmatpush2.msra.mxu0 0.0
    %603 = vmatprep.subr.mxu0 0.0
    %604 = vmatpush2.msra.mxu0 0.0
    %605 = vmatprep.subr.mxu0 0.0
    %606 = vmatpush2.msra.mxu0 0.0
    %607 = vmatprep.subr.mxu0 0.0
    %608 = vmatpush2.msra.mxu0 0.0
    %609 = vmatprep.subr.mxu0 0.0
    %610 = vmatpush2.msra.mxu0 0.0
    %611 = vmatprep.subr.mxu0 0.0
    %612 = vmatpush2.msra.mxu0 0.0
    %613 = vmatprep.mubr.f32.mxu0 0.0
    %614 = vmatmul.mubr.f32.gmra.mxu0 %v545
    %v615 = vpop.f32.mrf.mxu0
    %v616 = vadd.f32 %v548, %v615
    %v617 = vpop.f32.mrf.mxu0
    %618 = vdwg.mxu0
    %v619 = vxor.u32 %v616, 2147483648
    %v620 = vmul.f32 %v619, 1.442695
    %v621 = vpow.pop %v620
    %v622 = vadd.f32 %v621, 1.0
    %v623 = vrcp.pop %v622
    %v624 = vmul.f32 1.0, %v623
    %625 = vst [vmem:[%s547] sm:$0xff] %v624
    %s626 = scalar_lea.vmem [#allocation3], 40
    %v627 = vld [vmem:[%s626] sm:$0xff]
    %628 = vmatprep.subr.mxu0 0.0
    %629 = vmatpush1.msra.mxu0 %v230
    %630 = vmatprep.subr.mxu0 0.0
    %631 = vmatpush1.msra.mxu0 %v229
    %632 = vmatprep.subr.mxu0 0.0
    %633 = vmatpush1.msra.mxu0 %v228
    %634 = vmatprep.subr.mxu0 0.0
    %635 = vmatpush1.msra.mxu0 %v227
    %636 = vmatprep.subr.mxu0 0.0
    %637 = vmatpush1.msra.mxu0 %v226
    %638 = vmatprep.subr.mxu0 0.0
    %639 = vmatpush1.msra.mxu0 %v225
    %640 = vmatprep.subr.mxu0 0.0
    %641 = vmatpush1.msra.mxu0 %v224
    %642 = vmatprep.subr.mxu0 0.0
    %643 = vmatpush1.msra.mxu0 %v223
    %644 = vmatprep.subr.mxu0 0.0
    %645 = vmatpush1.msra.mxu0 %v222
    %646 = vmatprep.subr.mxu0 0.0
    %647 = vmatpush1.msra.mxu0 %v221
    %648 = vmatprep.subr.mxu0 0.0
    %649 = vmatpush1.msra.mxu0 %v220
    %650 = vmatprep.subr.mxu0 0.0
    %651 = vmatpush1.msra.mxu0 %v219
    %652 = vmatprep.subr.mxu0 0.0
    %653 = vmatpush1.msra.mxu0 %v218
    %654 = vmatprep.subr.mxu0 0.0
    %655 = vmatpush1.msra.mxu0 %v217
    %656 = vmatprep.subr.mxu0 0.0
    %657 = vmatpush1.msra.mxu0 %v216
    %658 = vmatprep.subr.mxu0 0.0
    %659 = vmatpush1.msra.mxu0 %v215
    %660 = vmatprep.subr.mxu0 0.0
    %661 = vmatpush2.msra.mxu0 0.0
    %662 = vmatprep.subr.mxu0 0.0
    %663 = vmatpush2.msra.mxu0 0.0
    %664 = vmatprep.subr.mxu0 0.0
    %665 = vmatpush2.msra.mxu0 0.0
    %666 = vmatprep.subr.mxu0 0.0
    %667 = vmatpush2.msra.mxu0 0.0
    %668 = vmatprep.subr.mxu0 0.0
    %669 = vmatpush2.msra.mxu0 0.0
    %670 = vmatprep.subr.mxu0 0.0
    %671 = vmatpush2.msra.mxu0 0.0
    %672 = vmatprep.subr.mxu0 0.0
    %673 = vmatpush2.msra.mxu0 0.0
    %674 = vmatprep.subr.mxu0 0.0
    %675 = vmatpush2.msra.mxu0 0.0
    %676 = vmatprep.subr.mxu0 0.0
    %677 = vmatpush2.msra.mxu0 0.0
    %678 = vmatprep.subr.mxu0 0.0
    %679 = vmatpush2.msra.mxu0 0.0
    %680 = vmatprep.subr.mxu0 0.0
    %681 = vmatpush2.msra.mxu0 0.0
    %682 = vmatprep.subr.mxu0 0.0
    %683 = vmatpush2.msra.mxu0 0.0
    %684 = vmatprep.subr.mxu0 0.0
    %685 = vmatpush2.msra.mxu0 0.0
    %686 = vmatprep.subr.mxu0 0.0
    %687 = vmatpush2.msra.mxu0 0.0
    %688 = vmatprep.subr.mxu0 0.0
    %689 = vmatpush2.msra.mxu0 0.0
    %690 = vmatprep.subr.mxu0 0.0
    %691 = vmatpush2.msra.mxu0 0.0
    %692 = vmatprep.mubr.f32.mxu0 0.0
    %693 = vmatmul.mubr.f32.gmra.mxu0 %v624
    %v694 = vpop.f32.mrf.mxu0
    %v695 = vadd.f32 %v627, %v694
    %v696 = vpop.f32.mrf.mxu0
    %697 = vdwg.mxu0
    %v698 = vxor.u32 %v695, 2147483648
    %v699 = vmul.f32 %v698, 1.442695
    %v700 = vpow.pop %v699
    %v701 = vadd.f32 %v700, 1.0
    %v702 = vrcp.pop %v701
    %v703 = vmul.f32 1.0, %v702
    %704 = vst [vmem:[%s626] sm:$0xff] %v703
    %s705 = scalar_lea.vmem [#allocation3], 48
    %v706 = vld [vmem:[%s705] sm:$0xff]
    %707 = vmatprep.subr.mxu0 0.0
    %708 = vmatpush1.msra.mxu0 %v230
    %709 = vmatprep.subr.mxu0 0.0
    %710 = vmatpush1.msra.mxu0 %v229
    %711 = vmatprep.subr.mxu0 0.0
    %712 = vmatpush1.msra.mxu0 %v228
    %713 = vmatprep.subr.mxu0 0.0
    %714 = vmatpush1.msra.mxu0 %v227
    %715 = vmatprep.subr.mxu0 0.0
    %716 = vmatpush1.msra.mxu0 %v226
    %717 = vmatprep.subr.mxu0 0.0
    %718 = vmatpush1.msra.mxu0 %v225
    %719 = vmatprep.subr.mxu0 0.0
    %720 = vmatpush1.msra.mxu0 %v224
    %721 = vmatprep.subr.mxu0 0.0
    %722 = vmatpush1.msra.mxu0 %v223
    %723 = vmatprep.subr.mxu0 0.0
    %724 = vmatpush1.msra.mxu0 %v222
    %725 = vmatprep.subr.mxu0 0.0
    %726 = vmatpush1.msra.mxu0 %v221
    %727 = vmatprep.subr.mxu0 0.0
    %728 = vmatpush1.msra.mxu0 %v220
    %729 = vmatprep.subr.mxu0 0.0
    %730 = vmatpush1.msra.mxu0 %v219
    %731 = vmatprep.subr.mxu0 0.0
    %732 = vmatpush1.msra.mxu0 %v218
    %733 = vmatprep.subr.mxu0 0.0
    %734 = vmatpush1.msra.mxu0 %v217
    %735 = vmatprep.subr.mxu0 0.0
    %736 = vmatpush1.msra.mxu0 %v216
    %737 = vmatprep.subr.mxu0 0.0
    %738 = vmatpush1.msra.mxu0 %v215
    %739 = vmatprep.subr.mxu0 0.0
    %740 = vmatpush2.msra.mxu0 0.0
    %741 = vmatprep.subr.mxu0 0.0
    %742 = vmatpush2.msra.mxu0 0.0
    %743 = vmatprep.subr.mxu0 0.0
    %744 = vmatpush2.msra.mxu0 0.0
    %745 = vmatprep.subr.mxu0 0.0
    %746 = vmatpush2.msra.mxu0 0.0
    %747 = vmatprep.subr.mxu0 0.0
    %748 = vmatpush2.msra.mxu0 0.0
    %749 = vmatprep.subr.mxu0 0.0
    %750 = vmatpush2.msra.mxu0 0.0
    %751 = vmatprep.subr.mxu0 0.0
    %752 = vmatpush2.msra.mxu0 0.0
    %753 = vmatprep.subr.mxu0 0.0
    %754 = vmatpush2.msra.mxu0 0.0
    %755 = vmatprep.subr.mxu0 0.0
    %756 = vmatpush2.msra.mxu0 0.0
    %757 = vmatprep.subr.mxu0 0.0
    %758 = vmatpush2.msra.mxu0 0.0
    %759 = vmatprep.subr.mxu0 0.0
    %760 = vmatpush2.msra.mxu0 0.0
    %761 = vmatprep.subr.mxu0 0.0
    %762 = vmatpush2.msra.mxu0 0.0
    %763 = vmatprep.subr.mxu0 0.0
    %764 = vmatpush2.msra.mxu0 0.0
    %765 = vmatprep.subr.mxu0 0.0
    %766 = vmatpush2.msra.mxu0 0.0
    %767 = vmatprep.subr.mxu0 0.0
    %768 = vmatpush2.msra.mxu0 0.0
    %769 = vmatprep.subr.mxu0 0.0
    %770 = vmatpush2.msra.mxu0 0.0
    %771 = vmatprep.mubr.f32.mxu0 0.0
    %772 = vmatmul.mubr.f32.gmra.mxu0 %v703
    %v773 = vpop.f32.mrf.mxu0
    %v774 = vadd.f32 %v706, %v773
    %v775 = vpop.f32.mrf.mxu0
    %776 = vdwg.mxu0
    %v777 = vxor.u32 %v774, 2147483648
    %v778 = vmul.f32 %v777, 1.442695
    %v779 = vpow.pop %v778
    %v780 = vadd.f32 %v779, 1.0
    %v781 = vrcp.pop %v780
    %v782 = vmul.f32 1.0, %v781
    %783 = vst [vmem:[%s705] sm:$0xff] %v782
    %s784 = scalar_lea.vmem [#allocation3], 56
    %v785 = vld [vmem:[%s784] sm:$0xff]
    %786 = vmatprep.subr.mxu0 0.0
    %787 = vmatpush1.msra.mxu0 %v230
    %788 = vmatprep.subr.mxu0 0.0
    %789 = vmatpush1.msra.mxu0 %v229
    %790 = vmatprep.subr.mxu0 0.0
    %791 = vmatpush1.msra.mxu0 %v228
    %792 = vmatprep.subr.mxu0 0.0
    %793 = vmatpush1.msra.mxu0 %v227
    %794 = vmatprep.subr.mxu0 0.0
    %795 = vmatpush1.msra.mxu0 %v226
    %796 = vmatprep.subr.mxu0 0.0
    %797 = vmatpush1.msra.mxu0 %v225
    %798 = vmatprep.subr.mxu0 0.0
    %799 = vmatpush1.msra.mxu0 %v224
    %800 = vmatprep.subr.mxu0 0.0
    %801 = vmatpush1.msra.mxu0 %v223
    %802 = vmatprep.subr.mxu0 0.0
    %803 = vmatpush1.msra.mxu0 %v222
    %804 = vmatprep.subr.mxu0 0.0
    %805 = vmatpush1.msra.mxu0 %v221
    %806 = vmatprep.subr.mxu0 0.0
    %807 = vmatpush1.msra.mxu0 %v220
    %808 = vmatprep.subr.mxu0 0.0
    %809 = vmatpush1.msra.mxu0 %v219
    %810 = vmatprep.subr.mxu0 0.0
    %811 = vmatpush1.msra.mxu0 %v218
    %812 = vmatprep.subr.mxu0 0.0
    %813 = vmatpush1.msra.mxu0 %v217
    %814 = vmatprep.subr.mxu0 0.0
    %815 = vmatpush1.msra.mxu0 %v216
    %816 = vmatprep.subr.mxu0 0.0
    %817 = vmatpush1.msra.mxu0 %v215
    %818 = vmatprep.subr.mxu0 0.0
    %819 = vmatpush2.msra.mxu0 0.0
    %820 = vmatprep.subr.mxu0 0.0
    %821 = vmatpush2.msra.mxu0 0.0
    %822 = vmatprep.subr.mxu0 0.0
    %823 = vmatpush2.msra.mxu0 0.0
    %824 = vmatprep.subr.mxu0 0.0
    %825 = vmatpush2.msra.mxu0 0.0
    %826 = vmatprep.subr.mxu0 0.0
    %827 = vmatpush2.msra.mxu0 0.0
    %828 = vmatprep.subr.mxu0 0.0
    %829 = vmatpush2.msra.mxu0 0.0
    %830 = vmatprep.subr.mxu0 0.0
    %831 = vmatpush2.msra.mxu0 0.0
    %832 = vmatprep.subr.mxu0 0.0
    %833 = vmatpush2.msra.mxu0 0.0
    %834 = vmatprep.subr.mxu0 0.0
    %835 = vmatpush2.msra.mxu0 0.0
    %836 = vmatprep.subr.mxu0 0.0
    %837 = vmatpush2.msra.mxu0 0.0
    %838 = vmatprep.subr.mxu0 0.0
    %839 = vmatpush2.msra.mxu0 0.0
    %840 = vmatprep.subr.mxu0 0.0
    %841 = vmatpush2.msra.mxu0 0.0
    %842 = vmatprep.subr.mxu0 0.0
    %843 = vmatpush2.msra.mxu0 0.0
    %844 = vmatprep.subr.mxu0 0.0
    %845 = vmatpush2.msra.mxu0 0.0
    %846 = vmatprep.subr.mxu0 0.0
    %847 = vmatpush2.msra.mxu0 0.0
    %848 = vmatprep.subr.mxu0 0.0
    %849 = vmatpush2.msra.mxu0 0.0
    %850 = vmatprep.mubr.f32.mxu0 0.0
    %851 = vmatmul.mubr.f32.gmra.mxu0 %v782
    %v852 = vpop.f32.mrf.mxu0
    %v853 = vadd.f32 %v785, %v852
    %v854 = vpop.f32.mrf.mxu0
    %855 = vdwg.mxu0
    %v856 = vxor.u32 %v853, 2147483648
    %v857 = vmul.f32 %v856, 1.442695
    %v858 = vpow.pop %v857
    %v859 = vadd.f32 %v858, 1.0
    %v860 = vrcp.pop %v859
    %v861 = vmul.f32 1.0, %v860
    %862 = vst [vmem:[%s784] sm:$0xff] %v861
    %863 = vst [vmem:[#allocation2] sm:$0xff] %v861
    %v864 = vld [vmem:[#allocation3] sm:$0xff]
    %v865 = vld [vmem:[#allocation3 + $0x8] sm:$0xff]
    %v866 = vld [vmem:[#allocation3 + $0x10] sm:$0xff]
    %v867 = vld [vmem:[#allocation3 + $0x18] sm:$0xff]
    %v868 = vld [vmem:[#allocation3 + $0x20] sm:$0xff]
    %v869 = vld [vmem:[#allocation3 + $0x28] sm:$0xff]
    %v870 = vld [vmem:[#allocation3 + $0x30] sm:$0xff]
    %v871 = vld [vmem:[#allocation3 + $0x38] sm:$0xff]
    %v872 = vld [vmem:[#allocation7] sm:$0xff]
    %v873 = vld [vmem:[#allocation7 + $0x8] sm:$0xff]
    %v874 = vld [vmem:[#allocation7 + $0x10] sm:$0xff]
    %v875 = vld [vmem:[#allocation7 + $0x18] sm:$0xff]
    %v876 = vld [vmem:[#allocation7 + $0x20] sm:$0xff]
    %v877 = vld [vmem:[#allocation7 + $0x28] sm:$0xff]
    %v878 = vld [vmem:[#allocation7 + $0x30] sm:$0xff]
    %v879 = vld [vmem:[#allocation7 + $0x38] sm:$0xff]
    %v880 = vld [vmem:[#allocation7 + $0x40] sm:$0xff]
    %v881 = vld [vmem:[#allocation7 + $0x48] sm:$0xff]
    %v882 = vld [vmem:[#allocation7 + $0x50] sm:$0xff]
    %v883 = vld [vmem:[#allocation7 + $0x58] sm:$0xff]
    %v884 = vld [vmem:[#allocation7 + $0x60] sm:$0xff]
    %v885 = vld [vmem:[#allocation7 + $0x68] sm:$0xff]
    %v886 = vld [vmem:[#allocation7 + $0x70] sm:$0xff]
    %v887 = vld [vmem:[#allocation7 + $0x78] sm:$0xff]
    %v888 = vld [vmem:[%s5] sm:$0x1]
    %v890 = vlaneseq
    %v891 = vshrl.u32 %v890, 7
    %v892 = vsub.s32 0, %v891
    %v893 = vrot.slane %v888, %v892
    %895 = vmatprep.subr.mxu0 0.0
    %896 = vmatpush1.msra.mxu0 %v887
    %897 = vmatprep.subr.mxu0 0.0
    %898 = vmatpush1.msra.mxu0 %v886
    %899 = vmatprep.subr.mxu0 0.0
    %900 = vmatpush1.msra.mxu0 %v885
    %901 = vmatprep.subr.mxu0 0.0
    %902 = vmatpush1.msra.mxu0 %v884
    %903 = vmatprep.subr.mxu0 0.0
    %904 = vmatpush1.msra.mxu0 %v883
    %905 = vmatprep.subr.mxu0 0.0
    %906 = vmatpush1.msra.mxu0 %v882
    %907 = vmatprep.subr.mxu0 0.0
    %908 = vmatpush1.msra.mxu0 %v881
    %909 = vmatprep.subr.mxu0 0.0
    %910 = vmatpush1.msra.mxu0 %v880
    %911 = vmatprep.subr.mxu0 0.0
    %912 = vmatpush1.msra.mxu0 %v879
    %913 = vmatprep.subr.mxu0 0.0
    %914 = vmatpush1.msra.mxu0 %v878
    %915 = vmatprep.subr.mxu0 0.0
    %916 = vmatpush1.msra.mxu0 %v877
    %917 = vmatprep.subr.mxu0 0.0
    %918 = vmatpush1.msra.mxu0 %v876
    %919 = vmatprep.subr.mxu0 0.0
    %920 = vmatpush1.msra.mxu0 %v875
    %921 = vmatprep.subr.mxu0 0.0
    %922 = vmatpush1.msra.mxu0 %v874
    %923 = vmatprep.subr.mxu0 0.0
    %924 = vmatpush1.msra.mxu0 %v873
    %925 = vmatprep.subr.mxu0 0.0
    %926 = vmatpush1.msra.mxu0 %v872
    %927 = vmatprep.subr.mxu0 0.0
    %928 = vmatpush2.msra.mxu0 0.0
    %929 = vmatprep.subr.mxu0 0.0
    %930 = vmatpush2.msra.mxu0 0.0
    %931 = vmatprep.subr.mxu0 0.0
    %932 = vmatpush2.msra.mxu0 0.0
    %933 = vmatprep.subr.mxu0 0.0
    %934 = vmatpush2.msra.mxu0 0.0
    %935 = vmatprep.subr.mxu0 0.0
    %936 = vmatpush2.msra.mxu0 0.0
    %937 = vmatprep.subr.mxu0 0.0
    %938 = vmatpush2.msra.mxu0 0.0
    %939 = vmatprep.subr.mxu0 0.0
    %940 = vmatpush2.msra.mxu0 0.0
    %941 = vmatprep.subr.mxu0 0.0
    %942 = vmatpush2.msra.mxu0 0.0
    %943 = vmatprep.subr.mxu0 0.0
    %944 = vmatpush2.msra.mxu0 0.0
    %945 = vmatprep.subr.mxu0 0.0
    %946 = vmatpush2.msra.mxu0 0.0
    %947 = vmatprep.subr.mxu0 0.0
    %948 = vmatpush2.msra.mxu0 0.0
    %949 = vmatprep.subr.mxu0 0.0
    %950 = vmatpush2.msra.mxu0 0.0
    %951 = vmatprep.subr.mxu0 0.0
    %952 = vmatpush2.msra.mxu0 0.0
    %953 = vmatprep.subr.mxu0 0.0
    %954 = vmatpush2.msra.mxu0 0.0
    %955 = vmatprep.subr.mxu0 0.0
    %956 = vmatpush2.msra.mxu0 0.0
    %957 = vmatprep.subr.mxu0 0.0
    %958 = vmatpush2.msra.mxu0 0.0
    %959 = vmatprep.mubr.f32.mxu0 0.0
    %960 = vmatmul.mubr.f32.gmra.mxu0 %v864
    %v961 = vpop.f32.mrf.mxu0
    %v962 = vadd.f32 %v893, %v961
    %v963 = vpop.f32.mrf.mxu0
    %964 = vmatprep.mubr.f32.mxu0 0.0
    %965 = vmatmul.mubr.f32.gmra.mxu0 %v865
    %v966 = vpop.f32.mrf.mxu0
    %v967 = vadd.f32 %v893, %v966
    %v968 = vpop.f32.mrf.mxu0
    %969 = vmatprep.mubr.f32.mxu0 0.0
    %970 = vmatmul.mubr.f32.gmra.mxu0 %v866
    %v971 = vpop.f32.mrf.mxu0
    %v972 = vadd.f32 %v893, %v971
    %v973 = vpop.f32.mrf.mxu0
    %974 = vmatprep.mubr.f32.mxu0 0.0
    %975 = vmatmul.mubr.f32.gmra.mxu0 %v867
    %v976 = vpop.f32.mrf.mxu0
    %v977 = vadd.f32 %v893, %v976
    %v978 = vpop.f32.mrf.mxu0
    %979 = vmatprep.mubr.f32.mxu0 0.0
    %980 = vmatmul.mubr.f32.gmra.mxu0 %v868
    %v981 = vpop.f32.mrf.mxu0
    %v982 = vadd.f32 %v893, %v981
    %v983 = vpop.f32.mrf.mxu0
    %984 = vmatprep.mubr.f32.mxu0 0.0
    %985 = vmatmul.mubr.f32.gmra.mxu0 %v869
    %v986 = vpop.f32.mrf.mxu0
    %v987 = vadd.f32 %v893, %v986
    %v988 = vpop.f32.mrf.mxu0
    %989 = vmatprep.mubr.f32.mxu0 0.0
    %990 = vmatmul.mubr.f32.gmra.mxu0 %v870
    %v991 = vpop.f32.mrf.mxu0
    %v992 = vadd.f32 %v893, %v991
    %v993 = vpop.f32.mrf.mxu0
    %994 = vmatprep.mubr.f32.mxu0 0.0
    %995 = vmatmul.mubr.f32.gmra.mxu0 %v871
    %v996 = vpop.f32.mrf.mxu0
    %v997 = vadd.f32 %v893, %v996
    %v998 = vpop.f32.mrf.mxu0
    %999 = vdwg.mxu0
    %1000 = vst [vmem:[#allocation9] sm:$0xff] %v962
    %1001 = vst [vmem:[#allocation9 + $0x8] sm:$0xff] %v967
    %1002 = vst [vmem:[#allocation9 + $0x10] sm:$0xff] %v972
    %1003 = vst [vmem:[#allocation9 + $0x18] sm:$0xff] %v977
    %1004 = vst [vmem:[#allocation9 + $0x20] sm:$0xff] %v982
    %1005 = vst [vmem:[#allocation9 + $0x28] sm:$0xff] %v987
    %1006 = vst [vmem:[#allocation9 + $0x30] sm:$0xff] %v992
    %1007 = vst [vmem:[#allocation9 + $0x38] sm:$0xff] %v997
    // Predicated region
    $region38: #{tpu_custom_call.1} parent=1 // pred_check
      _
    $region39: #{tpu_custom_call.1} parent=1 // pred_check_branch
      %1009 = sbr.rel (0) target = $region41
    $region40: #{tpu_custom_call.1} parent=1 // pred_region
      %s1011 = ssub.s32 1024, 1024
      %1012 = vsyncadd [#allocation6], %s1011
      %s1013 = sshll.u32 [#allocation9], 4
      %s1014 = int_to_ptr.vmem [resolvable:$true] %s1013
      %1019 = dma.vmem_to_hbm [thread:$0]  %s1014, 1024, %s6, [#allocation6], 128, 128, 8
    $region41: #{tpu_custom_call.1} parent=1 // pred_fallthru
      _
    // Predicated region
    $region42: #{tpu_custom_call.1} parent=1 // pred_check
      _
    $region43: #{tpu_custom_call.1} parent=1 // pred_check_branch
      %1021 = sbr.rel (0) target = $region45
    $region44: #{tpu_custom_call.1} parent=1 // pred_region
      %1022 = dma.done [#allocation6], 1024
    $region45: #{tpu_custom_call.1} parent=1 // pred_fallthru
      _
    %1023 = vsyncpa [#allocation5], 1
    %1024 = vsyncpa [#allocation8], 1
    %1025 = vsyncpa [#allocation6], 1

</llo_original>
